<compile_context>
chip_gen: v7x
topology: tpu7x:2x2x1
jax: 0.10.0
libtpu: 0.0.40
codegen_flags: <defaults>
</compile_context>

<pallas_src>
import jax
import jax.numpy as jnp
from jax.experimental import pallas as pl
from jax.experimental.pallas import tpu as pltpu


# ----------------------------- Pallas kernel ------------------------------ #

def _make_gather_kernel(tokens_per_block, window=16):
    """Build a DMA-gather kernel for a fixed token tile size."""
    window = min(window, tokens_per_block)

    def kernel(ids_ref, table_ref, out_ref, gather_buf, sem):
        # ids_ref    : (N_pad,)          int32   SMEM (scalar prefetch)
        # table_ref  : (V, D_pad)        f32     HBM (memory_space=pl.ANY)
        # out_ref    : (TOK, D_pad)      f32     VMEM (pipelined output block)
        # gather_buf : (TOK, D_pad)      f32     VMEM scratch (DMA landing zone)
        # sem        : ()                DMA semaphore
        base = pl.program_id(0) * tokens_per_block

        def row_copy(j):
            # Row id is always in [0, V): word ids < V and pad id = V - 1.
            row = ids_ref[base + j]
            return pltpu.make_async_copy(
                table_ref.at[pl.ds(row, 1), :],
                gather_buf.at[pl.ds(j, 1), :],
                sem,
            )

        # Prime the pipeline with `window` outstanding row DMAs.
        @pl.loop(0, window)
        def _(j):
            row_copy(j).start()

        # Steady state: launch row j + window, retire row j.  Only the
        # aggregate byte count matters; all rows have landed once the loop
        # (and therefore all tokens_per_block waits) completes.
        @pl.loop(0, tokens_per_block)
        def _(j):
            @pl.when(j + window < tokens_per_block)
            def _():
                row_copy(j + window).start()

            row_copy(j).wait()

        # Lane-dense (TOK, D_pad) store into the pipelined output block.
        out_ref[...] = gather_buf[...]

    return kernel


def embedding_lookup(ids_flat, table, *, tokens_per_block=256):
    """ids_flat: (N,) int32 with N % tokens_per_block == 0.
       table   : (V, D_pad) float32 with D_pad % 128 == 0.
       returns : (N, D_pad) float32 gathered rows."""
    n = ids_flat.shape[0]
    v, d = table.shape
    assert n % tokens_per_block == 0
    assert d % 128 == 0

    grid = (n // tokens_per_block,)
    kernel = _make_gather_kernel(tokens_per_block)

    return pl.pallas_call(
        kernel,
        out_shape=jax.ShapeDtypeStruct((n, d), table.dtype),
        grid_spec=pltpu.PrefetchScalarGridSpec(
            num_scalar_prefetch=1,          # ids -> SMEM, visible to index_maps
            grid=grid,
            in_specs=[
                # Embedding table stays in HBM; rows are DMA'd on demand.
                pl.BlockSpec(memory_space=pl.ANY),
            ],
            out_specs=pl.BlockSpec(
                (tokens_per_block, d), lambda i, ids: (i, 0)
            ),
            scratch_shapes=[
                pltpu.VMEM((tokens_per_block, d), table.dtype),
                pltpu.SemaphoreType.DMA(()),
            ],
        ),
        compiler_params=pltpu.CompilerParams(
            dimension_semantics=("parallel",),
        ),
    )(ids_flat, table)


# --------------------------- Module-level glue ----------------------------- #

class GetEmbedding:
    """JAX/Pallas port of get_embedding (synthetic GloVe table)."""

    def __init__(self, vocab_size, glove_dim, word2id, glove_weight,
                 tokens_per_block=256):
        self.vocab_size = vocab_size
        self.word_dim = glove_dim
        self.word2id = word2id
        self.tokens_per_block = tokens_per_block

        # Pad the embedding dim up to a multiple of 128 once, on the host,
        # so every output tile is lane-dense (unmasked vst, contiguous DMA).
        d_pad = ((glove_dim + 127) // 128) * 128
        if d_pad != glove_dim:
            glove_weight = jnp.pad(
                glove_weight, ((0, 0), (0, d_pad - glove_dim))
            )
        self.d_pad = d_pad
        self.glove = glove_weight           # (vocab_size, d_pad) float32

    def __call__(self, sentence_lists):
        return self.get_glove(sentence_lists)

    def get_glove(self, sentence_lists):
        # Python-side preprocessing (identical to the PyTorch module):
        max_len = max(len(s) for s in sentence_lists)
        ids = [[self.word2id.get(w, 0) for w in s] for s in sentence_lists]
        ids = [s + [self.vocab_size - 1] * (max_len - len(s)) for s in ids]

        b = len(ids)
        t = max_len
        ids_arr = jnp.asarray(ids, dtype=jnp.int32).reshape(b * t)

        # Pad token count up to a multiple of the kernel's token tile.
        tok = self.tokens_per_block
        n = b * t
        n_pad = ((n + tok - 1) // tok) * tok
        if n_pad != n:
            ids_arr = jnp.concatenate(
                [ids_arr, jnp.zeros((n_pad - n,), dtype=jnp.int32)], axis=0
            )

        out_flat = embedding_lookup(ids_arr, self.glove, tokens_per_block=tok)
        out_flat = out_flat[:n, : self.word_dim]
        return out_flat.reshape(b, t, self.word_dim)


# --------------------------------- Main ------------------------------------ #

if __name__ == "__main__":
    VOCAB_SIZE = 64
    GLOVE_DIM = 128

    key = jax.random.PRNGKey(0)
    glove_weight = jax.random.normal(key, (VOCAB_SIZE, GLOVE_DIM), jnp.float32)

    # Deterministic synthetic word2id (stands in for the .npy file load).
    words = [f"w{i}" for i in range(1, VOCAB_SIZE - 1)]
    word2id = {w: i + 1 for i, w in enumerate(words)}   # 0 = <unk>

    module = GetEmbedding(VOCAB_SIZE, GLOVE_DIM, word2id, glove_weight)

    # batch=2 sentences (ragged -> padded to max_len=8)
    sentences = [
        ["w1", "w5", "unknown_word", "w10", "w3"],
        ["w2", "w4", "w6", "w8", "w10", "w12", "w14", "w16"],
    ]

    out = module(sentences)
    out = jax.block_until_ready(out)

    # Pure-JAX reference check of the gather semantics.
    max_len = max(len(s) for s in sentences)
    ref_ids = [[word2id.get(w, 0) for w in s] for s in sentences]
    ref_ids = [s + [VOCAB_SIZE - 1] * (max_len - len(s)) for s in ref_ids]
    ref_ids = jnp.asarray(ref_ids, dtype=jnp.int32)
    ref = jnp.take(glove_weight, ref_ids, axis=0)

    assert out.shape == (2, max_len, GLOVE_DIM), out.shape
    assert out.dtype == jnp.float32
    assert jnp.allclose(out, ref, atol=1e-5), "mismatch vs reference gather"

    print("KERNEL_OK")
</pallas_src>

<mosaic_0001>
module attributes {stable_mosaic.version = 11 : i64} {
  func.func @kernel(%arg0: i32, %arg1: memref<256xi32, #tpu.memory_space<smem>>, %arg2: memref<64x128xf32, #tpu.memory_space<any>>, %arg3: memref<256x128xf32, #tpu.memory_space<vmem>>, %arg4: memref<256x128xf32, #tpu.memory_space<vmem>>, %arg5: memref<!tpu.dma_semaphore, #tpu.memory_space<semaphore_mem>>) attributes {dimension_semantics = [#tpu.dimension_semantics<parallel>], iteration_bounds = array<i64: 1>, scalar_prefetch = 1 : i64, scratch_operands = 2 : i64, tpu.core_type = #tpu.core_type<tc>, window_params = [{}, {transform_indices = @transform_1, window_bounds = array<i64: 256, 128>}]} {
    %c256_i32 = arith.constant 256 : i32
    %0 = arith.muli %arg0, %c256_i32 : i32
    %c0_i32 = arith.constant 0 : i32
    %c16_i32 = arith.constant 16 : i32
    %1 = arith.addi %c0_i32, %c16_i32 : i32
    %c1_i32 = arith.constant 1 : i32
    scf.for %arg6 = %c0_i32 to %1 step %c1_i32  : i32 {
      %c1_i32_8 = arith.constant 1 : i32
      %5 = arith.muli %arg6, %c1_i32_8 : i32
      %c0_i32_9 = arith.constant 0 : i32
      %6 = arith.addi %c0_i32_9, %5 : i32
      %7 = arith.addi %0, %6 : i32
      %8 = arith.index_cast %7 : i32 to index
      %9 = memref.load %arg1[%8] : memref<256xi32, #tpu.memory_space<smem>>
      %c0_i32_10 = arith.constant 0 : i32
      %10 = tpu.memref_slice %arg2[%9, %c0_i32_10] : memref<64x128xf32, #tpu.memory_space<any>> -> memref<1x128xf32, #tpu.memory_space<any>>
      %c0_i32_11 = arith.constant 0 : i32
      %11 = tpu.memref_slice %arg4[%6, %c0_i32_11] : memref<256x128xf32, #tpu.memory_space<vmem>> -> memref<1x128xf32, #tpu.memory_space<vmem>>
      tpu.enqueue_dma source(%10 : memref<1x128xf32, #tpu.memory_space<any>>) target(%11 : memref<1x128xf32, #tpu.memory_space<vmem>>) target_semaphore(%arg5 : memref<!tpu.dma_semaphore, #tpu.memory_space<semaphore_mem>>)
    }
    %c16_i32_0 = arith.constant 16 : i32
    %c0_i32_1 = arith.constant 0 : i32
    %c256_i32_2 = arith.constant 256 : i32
    %2 = arith.addi %c0_i32_1, %c256_i32_2 : i32
    %c1_i32_3 = arith.constant 1 : i32
    scf.for %arg6 = %c0_i32_1 to %2 step %c1_i32_3  : i32 {
      %c1_i32_8 = arith.constant 1 : i32
      %5 = arith.muli %arg6, %c1_i32_8 : i32
      %c0_i32_9 = arith.constant 0 : i32
      %6 = arith.addi %c0_i32_9, %5 : i32
      %c16_i32_10 = arith.constant 16 : i32
      %7 = arith.addi %6, %c16_i32_10 : i32
      %c256_i32_11 = arith.constant 256 : i32
      %8 = arith.cmpi slt, %7, %c256_i32_11 : i32
      %9 = arith.extui %8 : i1 to i32
      %c0_i32_12 = arith.constant 0 : i32
      %10 = arith.cmpi ne, %9, %c0_i32_12 : i32
      scf.if %10 {
        %c16_i32_15 = arith.constant 16 : i32
        %16 = arith.addi %6, %c16_i32_15 : i32
        %17 = arith.addi %0, %16 : i32
        %18 = arith.index_cast %17 : i32 to index
        %19 = memref.load %arg1[%18] : memref<256xi32, #tpu.memory_space<smem>>
        %c0_i32_16 = arith.constant 0 : i32
        %20 = tpu.memref_slice %arg2[%19, %c0_i32_16] : memref<64x128xf32, #tpu.memory_space<any>> -> memref<1x128xf32, #tpu.memory_space<any>>
        %c0_i32_17 = arith.constant 0 : i32
        %21 = tpu.memref_slice %arg4[%16, %c0_i32_17] : memref<256x128xf32, #tpu.memory_space<vmem>> -> memref<1x128xf32, #tpu.memory_space<vmem>>
        tpu.enqueue_dma source(%20 : memref<1x128xf32, #tpu.memory_space<any>>) target(%21 : memref<1x128xf32, #tpu.memory_space<vmem>>) target_semaphore(%arg5 : memref<!tpu.dma_semaphore, #tpu.memory_space<semaphore_mem>>)
      } else {
      }
      %11 = arith.addi %0, %6 : i32
      %12 = arith.index_cast %11 : i32 to index
      %13 = memref.load %arg1[%12] : memref<256xi32, #tpu.memory_space<smem>>
      %c0_i32_13 = arith.constant 0 : i32
      %14 = tpu.memref_slice %arg2[%13, %c0_i32_13] : memref<64x128xf32, #tpu.memory_space<any>> -> memref<1x128xf32, #tpu.memory_space<any>>
      %c0_i32_14 = arith.constant 0 : i32
      %15 = tpu.memref_slice %arg4[%6, %c0_i32_14] : memref<256x128xf32, #tpu.memory_space<vmem>> -> memref<1x128xf32, #tpu.memory_space<vmem>>
      tpu.wait_dma2 semaphore(%arg5 : memref<!tpu.dma_semaphore, #tpu.memory_space<semaphore_mem>>) src(%14 : memref<1x128xf32, #tpu.memory_space<any>>) dst(%15 : memref<1x128xf32, #tpu.memory_space<vmem>>)
    }
    %c256_i32_4 = arith.constant 256 : i32
    %c0 = arith.constant 0 : index
    %c0_5 = arith.constant 0 : index
    %3 = vector.load %arg4[%c0, %c0_5] : memref<256x128xf32, #tpu.memory_space<vmem>>, vector<256x128xf32>
    %c0_6 = arith.constant 0 : index
    %c0_7 = arith.constant 0 : index
    %4 = vector.load %arg3[%c0_6, %c0_7] : memref<256x128xf32, #tpu.memory_space<vmem>>, vector<256x128xf32>
    tpu.vector_store %arg3[%c0_6, %c0_7], %3 {strides = array<i32>} : memref<256x128xf32, #tpu.memory_space<vmem>>, vector<256x128xf32>,
    return
  }
  func.func @transform_1(%arg0: i32, %arg1: memref<256xi32, #tpu.memory_space<smem>>) -> (i32, i32) {
    %c0_i32 = arith.constant 0 : i32
    %c0_i32_0 = arith.constant 0 : i32
    return %arg0, %c0_i32 : i32, i32
  }
}

</mosaic_0001>

<llo_original>
// kernel: tpu_custom_call.1
$region0: #{tpu_custom_call.1}
  #allocation0 [shape = 'u32[]', space=smem, size = 0x4, offset = 0x4, fixed_abs, tag = 'smem constant byte address 0x4 - core index']
  #allocation1 [shape = 'u32[144,128]{1,0:T(1,128)}', space=vmem, size = 0x12000, scoped, tag = 'internal scratch']
  #allocation2 [shape = 'f32[256,128]{1,0:T(8,128)}', space=vmem, size = 0x20000, scoped, tag = 'scratch operand']
  #allocation3 [shape = 's32[1]{0}', space=sflag, size = 0x4, scoped, tag = 'scratch operand']
  #allocation4 [shape = 's32[1]{0}', space=sflag, size = 0x4, scoped, tag = 'scoped memory for tpu_custom_call.1']
  #allocation5 [shape = 'u8[1024]{0}', space=smem, size = 0x400, scoped, tag = 'prefetched SMEM operand 0']
  #allocation8 [shape = 's32[]', space=sflag, size = 0x4, offset = 0, fixed_abs, tag = 'sflag constant byte address 0x0 - dummy sync flag']
  #allocation9 [shape = 's32[]', space=sflag, size = 0x4, offset = 0, fixed_abs, tag = 'sflag constant byte address 0x0 - dummy sync flag']
  #allocation10 [shape = 'u32[]', space=smem, size = 0x4, offset = 0x44, fixed_abs, tag = 'smem constant byte address 0x44 - assertion arg 0']
  #allocation11 [shape = 'u32[]', space=smem, size = 0x4, offset = 0x48, fixed_abs, tag = 'smem constant byte address 0x48 - assertion arg 1']
  #allocation12 [shape = 's32[]', space=sflag, size = 0x4, offset = 0, fixed_abs, tag = 'sflag constant byte address 0x0 - dummy sync flag']
  #allocation13 [shape = 's32[]', space=sflag, size = 0x4, offset = 0, fixed_abs, tag = 'sflag constant byte address 0x0 - dummy sync flag']
  %s0 = inlined_call_operand.hbm [shape: s32[256], index: 0, kind: input, shape index: {}]
  %s1 = inlined_call_operand.hbm [shape: f32[64,128], index: 1, kind: input, shape index: {}]
  %s2 = inlined_call_operand.hbm [shape: f32[256,128], index: 2, kind: output, shape index: {}]
  %s3 = sld [smem:[#allocation0]]
  $region36: #{tpu_custom_call.1} parent=0
    _
  %s5 = ssub.s32 1, %s3
  %s6 = scalar_select 0, %s5, %s3
  %8 = dma.hbm_to_smem %s0, 32, [#allocation5], [#allocation4]
  %9 = dma.done [#allocation4], 32
  %10 = sfence
  $region1: #{tpu_custom_call.1} parent=0
    #allocation6 [shape = 'u8[131072]{0}', space=vmem, size = 0x20000, scoped, tag = 'output window, operand 0, single buffered']
    #allocation7 [shape = 's32[1]{0}', space=sflag, size = 0x4, scoped, tag = 'scoped memory for tpu_custom_call.1']
    %11 = vsyncpa [#allocation7], 0
    %s12 = smul.u32 0, 256
    loop: start=0, step=1, limit=16
    $region2: #{tpu_custom_call.1} parent=1 // loop_pre_header
      _
    $region3: #{tpu_custom_call.1} parent=1 // loop_header
      %s14 = sphi 0, %s18
      %p15 = scmp.ge.s32.totalorder %s14, 16
    $region4: #{tpu_custom_call.1} parent=1 // loop_header_branch
      %17 = sbr.rel (%p15) target = $region8
    $region5: #{tpu_custom_call.1} parent=1 // loop_body
      %s19 = sadd.s32 %s12, %s14
      %s20 = sld [smem:[#allocation5 + %s19]]
      %s21 = smul.addr %s20, 16
      %s22 = scalar_lea.hbm %s1, %s21
      %s23 = scalar_lea.vmem [#allocation2], %s14
      // Predicated region
      $region9: #{tpu_custom_call.1} parent=5 // pred_check
        _
      $region10: #{tpu_custom_call.1} parent=5 // pred_check_branch
        %25 = sbr.rel target = $region12
      $region11: #{tpu_custom_call.1} parent=5 // pred_region
        %26 = sst [smem:[#allocation10]] [#allocation9]
        %27 = sst [smem:[#allocation11]] [#allocation8]
      $region12: #{tpu_custom_call.1} parent=5 // pred_fallthru
        _
      %29 = shalt.err (0)
      %s31 = sshll.u32 %s23, 4
      %s32 = int_to_ptr.vmem [resolvable:$true] %s31
      %34 = dma.hbm_to_vmem [thread:$0]  %s22, 16, %s32, [#allocation3]
    $region6: #{tpu_custom_call.1} parent=1 // loop_footer
      %s18 = sadd.s32 1, %s14
    $region7: #{tpu_custom_call.1} parent=1 // loop_footer_branch
      %13 = sbr.rel target = $region3
    $region8: #{tpu_custom_call.1} parent=1 // loop_exit
      _
    loop: start=0, step=1, limit=256
    $region13: #{tpu_custom_call.1} parent=1 // loop_pre_header
      _
    $region14: #{tpu_custom_call.1} parent=1 // loop_header
      %s36 = sphi 0, %s40
      %p37 = scmp.ge.s32.totalorder %s36, 256
    $region15: #{tpu_custom_call.1} parent=1 // loop_header_branch
      %39 = sbr.rel (%p37) target = $region19
    $region16: #{tpu_custom_call.1} parent=1 // loop_body
      %s41 = sadd.s32 %s36, 16
      %p42 = scmp.lt.s32.totalorder %s41, 256
      // Predicated region
      $region20: #{tpu_custom_call.1} parent=16 // pred_check
        %p43 = pneg %p42
      $region21: #{tpu_custom_call.1} parent=16 // pred_check_branch
        %45 = sbr.rel (%p43) target = $region23
      $region22: #{tpu_custom_call.1} parent=16 // pred_region
        %s46 = sadd.s32 %s12, %s41
        %s47 = sld [smem:[#allocation5 + %s46]]
        %s48 = smul.addr %s47, 16
        %s49 = scalar_lea.hbm %s1, %s48
        %s50 = scalar_lea.vmem [#allocation2], %s41
        // Predicated region
        $region24: #{tpu_custom_call.1} parent=22 // pred_check
          _
        $region25: #{tpu_custom_call.1} parent=22 // pred_check_branch
          %52 = sbr.rel target = $region27
        $region26: #{tpu_custom_call.1} parent=22 // pred_region
          %53 = sst [smem:[#allocation10]] [#allocation13]
          %54 = sst [smem:[#allocation11]] [#allocation12]
        $region27: #{tpu_custom_call.1} parent=22 // pred_fallthru
          _
        %56 = shalt.err (0)
        %s58 = sshll.u32 %s50, 4
        %s59 = int_to_ptr.vmem [resolvable:$true] %s58
        %61 = dma.hbm_to_vmem [thread:$0]  %s49, 16, %s59, [#allocation3]
      $region23: #{tpu_custom_call.1} parent=16 // pred_fallthru
        _
      %s62 = sadd.s32 %s12, %s36
      %s63 = sld [smem:[#allocation5 + %s62]]
      %s64 = smul.u32 1, 1
      %s65 = sshll.u32 %s64, 4
      %66 = dma.done [#allocation3], %s65
    $region17: #{tpu_custom_call.1} parent=1 // loop_footer
      %s40 = sadd.s32 1, %s36
    $region18: #{tpu_custom_call.1} parent=1 // loop_footer_branch
      %35 = sbr.rel target = $region14
    $region19: #{tpu_custom_call.1} parent=1 // loop_exit
      _
    %v67 = vld [vmem:[#allocation2] sm:$0xff]
    %v68 = vld [vmem:[#allocation2 + $0x8] sm:$0xff]
    %v69 = vld [vmem:[#allocation2 + $0x10] sm:$0xff]
    %v70 = vld [vmem:[#allocation2 + $0x18] sm:$0xff]
    %v71 = vld [vmem:[#allocation2 + $0x20] sm:$0xff]
    %v72 = vld [vmem:[#allocation2 + $0x28] sm:$0xff]
    %v73 = vld [vmem:[#allocation2 + $0x30] sm:$0xff]
    %v74 = vld [vmem:[#allocation2 + $0x38] sm:$0xff]
    %v75 = vld [vmem:[#allocation2 + $0x40] sm:$0xff]
    %v76 = vld [vmem:[#allocation2 + $0x48] sm:$0xff]
    %v77 = vld [vmem:[#allocation2 + $0x50] sm:$0xff]
    %v78 = vld [vmem:[#allocation2 + $0x58] sm:$0xff]
    %v79 = vld [vmem:[#allocation2 + $0x60] sm:$0xff]
    %v80 = vld [vmem:[#allocation2 + $0x68] sm:$0xff]
    %v81 = vld [vmem:[#allocation2 + $0x70] sm:$0xff]
    %v82 = vld [vmem:[#allocation2 + $0x78] sm:$0xff]
    %v83 = vld [vmem:[#allocation2 + $0x80] sm:$0xff]
    %v84 = vld [vmem:[#allocation2 + $0x88] sm:$0xff]
    %v85 = vld [vmem:[#allocation2 + $0x90] sm:$0xff]
    %v86 = vld [vmem:[#allocation2 + $0x98] sm:$0xff]
    %v87 = vld [vmem:[#allocation2 + $0xa0] sm:$0xff]
    %v88 = vld [vmem:[#allocation2 + $0xa8] sm:$0xff]
    %v89 = vld [vmem:[#allocation2 + $0xb0] sm:$0xff]
    %v90 = vld [vmem:[#allocation2 + $0xb8] sm:$0xff]
    %v91 = vld [vmem:[#allocation2 + $0xc0] sm:$0xff]
    %v92 = vld [vmem:[#allocation2 + $0xc8] sm:$0xff]
    %v93 = vld [vmem:[#allocation2 + $0xd0] sm:$0xff]
    %v94 = vld [vmem:[#allocation2 + $0xd8] sm:$0xff]
    %v95 = vld [vmem:[#allocation2 + $0xe0] sm:$0xff]
    %v96 = vld [vmem:[#allocation2 + $0xe8] sm:$0xff]
    %v97 = vld [vmem:[#allocation2 + $0xf0] sm:$0xff]
    %v98 = vld [vmem:[#allocation2 + $0xf8] sm:$0xff]
    %99 = vst [vmem:[#allocation6] sm:$0xff] %v67
    %100 = vst [vmem:[#allocation6 + $0x8] sm:$0xff] %v68
    %101 = vst [vmem:[#allocation6 + $0x10] sm:$0xff] %v69
    %102 = vst [vmem:[#allocation6 + $0x18] sm:$0xff] %v70
    %103 = vst [vmem:[#allocation6 + $0x20] sm:$0xff] %v71
    %104 = vst [vmem:[#allocation6 + $0x28] sm:$0xff] %v72
    %105 = vst [vmem:[#allocation6 + $0x30] sm:$0xff] %v73
    %106 = vst [vmem:[#allocation6 + $0x38] sm:$0xff] %v74
    %107 = vst [vmem:[#allocation6 + $0x40] sm:$0xff] %v75
    %108 = vst [vmem:[#allocation6 + $0x48] sm:$0xff] %v76
    %109 = vst [vmem:[#allocation6 + $0x50] sm:$0xff] %v77
    %110 = vst [vmem:[#allocation6 + $0x58] sm:$0xff] %v78
    %111 = vst [vmem:[#allocation6 + $0x60] sm:$0xff] %v79
    %112 = vst [vmem:[#allocation6 + $0x68] sm:$0xff] %v80
    %113 = vst [vmem:[#allocation6 + $0x70] sm:$0xff] %v81
    %114 = vst [vmem:[#allocation6 + $0x78] sm:$0xff] %v82
    %115 = vst [vmem:[#allocation6 + $0x80] sm:$0xff] %v83
    %116 = vst [vmem:[#allocation6 + $0x88] sm:$0xff] %v84
    %117 = vst [vmem:[#allocation6 + $0x90] sm:$0xff] %v85
    %118 = vst [vmem:[#allocation6 + $0x98] sm:$0xff] %v86
    %119 = vst [vmem:[#allocation6 + $0xa0] sm:$0xff] %v87
    %120 = vst [vmem:[#allocation6 + $0xa8] sm:$0xff] %v88
    %121 = vst [vmem:[#allocation6 + $0xb0] sm:$0xff] %v89
    %122 = vst [vmem:[#allocation6 + $0xb8] sm:$0xff] %v90
    %123 = vst [vmem:[#allocation6 + $0xc0] sm:$0xff] %v91
    %124 = vst [vmem:[#allocation6 + $0xc8] sm:$0xff] %v92
    %125 = vst [vmem:[#allocation6 + $0xd0] sm:$0xff] %v93
    %126 = vst [vmem:[#allocation6 + $0xd8] sm:$0xff] %v94
    %127 = vst [vmem:[#allocation6 + $0xe0] sm:$0xff] %v95
    %128 = vst [vmem:[#allocation6 + $0xe8] sm:$0xff] %v96
    %129 = vst [vmem:[#allocation6 + $0xf0] sm:$0xff] %v97
    %130 = vst [vmem:[#allocation6 + $0xf8] sm:$0xff] %v98
    // Predicated region
    $region28: #{tpu_custom_call.1} parent=1 // pred_check
      _
    $region29: #{tpu_custom_call.1} parent=1 // pred_check_branch
      %132 = sbr.rel (0) target = $region31
    $region30: #{tpu_custom_call.1} parent=1 // pred_region
      %s134 = ssub.s32 4096, 4096
      %135 = vsyncadd [#allocation7], %s134
      %s136 = sshll.u32 [#allocation6], 4
      %s137 = int_to_ptr.vmem [resolvable:$true] %s136
      %142 = dma.vmem_to_hbm [thread:$0]  %s137, 4096, %s2, [#allocation7], 128, 128, 8
    $region31: #{tpu_custom_call.1} parent=1 // pred_fallthru
      _
    // Predicated region
    $region32: #{tpu_custom_call.1} parent=1 // pred_check
      _
    $region33: #{tpu_custom_call.1} parent=1 // pred_check_branch
      %144 = sbr.rel (0) target = $region35
    $region34: #{tpu_custom_call.1} parent=1 // pred_region
      %145 = dma.done [#allocation7], 4096
    $region35: #{tpu_custom_call.1} parent=1 // pred_fallthru
      _
    %146 = vsyncpa [#allocation7], 1
  %147 = vsyncmov [#allocation3]
  %s148 = vpop.sfrf %147
  %p149 = scmp.eq.s32.totalorder %s148, 0
  %p150 = pneg %p149
  %152 = shalt.err (%p150)

</llo_original>
